<compile_context>
chip_gen: v7x
topology: tpu7x:2x2x1
jax: 0.10.0
libtpu: 0.0.40
codegen_flags: <defaults>
</compile_context>

<pallas_src>
import jax
import jax.numpy as jnp
from jax.experimental import pallas as pl
from jax.experimental.pallas import tpu as pltpu


def phenotype_kernel(c_ref, at_ref, w_c_ref, w_at_ref, b_ref, o_ref):
    # Single fused affine: out = class @ Wc + [age|tiv] @ Wat + b
    acc = jnp.dot(c_ref[...], w_c_ref[...], preferred_element_type=jnp.float32)
    acc = acc + jnp.dot(at_ref[...], w_at_ref[...],
                        preferred_element_type=jnp.float32)
    o_ref[...] = (acc + b_ref[...]).astype(o_ref.dtype)


def _round_up(a, m):
    return ((a + m - 1) // m) * m


def phenotype_layer(_class, _age, _tiv, params, *, max_tile=8192):
    """Fused PhenotypeLayer forward via a single batch-gridded Pallas kernel."""
    wc, bc = params["layer1_c"]   # (32, 80), (32,)
    wa, ba = params["layer1_a"]   # (32, 1),  (32,)
    wt, bt = params["layer1_t"]   # (32, 1),  (32,)
    w2, b2 = params["layer2"]     # (2, 32),  (2,)

    # Fuse layer2 into layer1 (tiny matmuls, done once in the wrapper):
    #   out = class @ (wc.T @ w2.T) + [age|tiv] @ ([wa|wt].T @ w2.T)
    #         + ((bc + ba + bt) @ w2.T + b2)
    w_c = wc.T @ w2.T                                   # (80, 2)
    w_at = jnp.concatenate([wa, wt], axis=1).T @ w2.T   # (2, 2)
    b = ((bc + ba + bt) @ w2.T + b2).reshape(1, -1)     # (1, 2)

    # Tiny side input (16 B/row); _class is streamed directly, no big concat.
    at = jnp.concatenate([_age, _tiv], axis=1)          # (B, 2)

    B, K = _class.shape                                 # K == 80
    O = w_c.shape[1]                                    # 2

    rows = _round_up(B, 8)
    if rows <= 8:
        TB = rows
    else:
        # Prefer >= 2 grid steps (v7x megacore), cap tile so the lane-padded
        # double-buffers stay comfortably inside VMEM on all generations.
        TB = min(max_tile, _round_up(-(-B // 2), 8))
    grid = pl.cdiv(B, TB)   # ragged last block handled by Pallas (no jnp.pad)

    out = pl.pallas_call(
        phenotype_kernel,
        out_shape=jax.ShapeDtypeStruct((B, O), jnp.float32),
        grid_spec=pltpu.PrefetchScalarGridSpec(
            num_scalar_prefetch=0,
            grid=(grid,),
            in_specs=[
                pl.BlockSpec((TB, K), lambda i: (i, 0)),  # streamed class rows
                pl.BlockSpec((TB, 2), lambda i: (i, 0)),  # streamed [age|tiv]
                pl.BlockSpec((K, O), lambda i: (0, 0)),   # resident fused W
                pl.BlockSpec((2, O), lambda i: (0, 0)),   # resident age/tiv W
                pl.BlockSpec((1, O), lambda i: (0, 0)),   # resident bias
            ],
            out_specs=pl.BlockSpec((TB, O), lambda i: (i, 0)),
        ),
        compiler_params=pltpu.CompilerParams(
            dimension_semantics=("parallel",),
            # Budget: 3 lane-padded (TB,128) f32 buffers, double-buffered
            # ~= 3 * 2 * TB * 512 B = 24 MiB at TB=8192 (< v7x 64 MiB physical).
            vmem_limit_bytes=48 * 1024 * 1024,
        ),
    )(_class, at, w_c, w_at, b)

    return out


def init_params(key):
    """Deterministic synthetic init (PyTorch nn.Linear shapes: weight (out,in), bias (out,))."""
    def linear(k, out_f, in_f):
        kw, kb = jax.random.split(k)
        bound = 1.0 / jnp.sqrt(in_f)
        w = jax.random.uniform(kw, (out_f, in_f), jnp.float32, -bound, bound)
        b = jax.random.uniform(kb, (out_f,), jnp.float32, -bound, bound)
        return w, b

    k1, k2, k3, k4 = jax.random.split(key, 4)
    return {
        "layer1_c": linear(k1, 32, 80),
        "layer1_a": linear(k2, 32, 1),
        "layer1_t": linear(k3, 32, 1),
        "layer2":   linear(k4, 2, 32),
    }


def phenotype_ref(_class, _age, _tiv, params):
    """Pure-JAX reference mirroring the PyTorch forward (two-step, unfused)."""
    wc, bc = params["layer1_c"]
    wa, ba = params["layer1_a"]
    wt, bt = params["layer1_t"]
    w2, b2 = params["layer2"]
    out_c = _class @ wc.T + bc
    out_a = _age @ wa.T + ba
    out_t = _tiv @ wt.T + bt
    return (out_c + out_t + out_a) @ w2.T + b2


if __name__ == "__main__":
    key = jax.random.PRNGKey(0)
    kp, kc, ka, kt = jax.random.split(key, 4)

    params = init_params(kp)

    # Case 1: sublane-aligned batch, single grid step.
    B = 8
    _class = jax.random.normal(kc, (B, 80), jnp.float32)
    _age   = jax.random.normal(ka, (B, 1), jnp.float32)
    _tiv   = jax.random.normal(kt, (B, 1), jnp.float32)

    out = phenotype_layer(_class, _age, _tiv, params)
    jax.block_until_ready(out)
    ref = phenotype_ref(_class, _age, _tiv, params)
    assert out.shape == (B, 2)
    assert jnp.allclose(out, ref, atol=1e-4, rtol=1e-4)

    # Case 2: ragged batch (grid=1, last block extends past B).
    B2 = 5
    out2 = phenotype_layer(_class[:B2], _age[:B2], _tiv[:B2], params)
    jax.block_until_ready(out2)
    ref2 = phenotype_ref(_class[:B2], _age[:B2], _tiv[:B2], params)
    assert out2.shape == (B2, 2)
    assert jnp.allclose(out2, ref2, atol=1e-4, rtol=1e-4)

    # Case 3: multi-step grid with a ragged tail (small shapes, tiny tile).
    B3 = 19
    kc3, ka3, kt3 = jax.random.split(jax.random.PRNGKey(1), 3)
    _class3 = jax.random.normal(kc3, (B3, 80), jnp.float32)
    _age3   = jax.random.normal(ka3, (B3, 1), jnp.float32)
    _tiv3   = jax.random.normal(kt3, (B3, 1), jnp.float32)
    out3 = phenotype_layer(_class3, _age3, _tiv3, params, max_tile=8)
    jax.block_until_ready(out3)
    ref3 = phenotype_ref(_class3, _age3, _tiv3, params)
    assert out3.shape == (B3, 2)
    assert jnp.allclose(out3, ref3, atol=1e-4, rtol=1e-4)

    print("KERNEL_OK")
</pallas_src>

<mosaic_0001>
module attributes {stable_mosaic.version = 11 : i64} {
  func.func @phenotype_kernel(%arg0: i32, %arg1: memref<8x80xf32, #tpu.memory_space<vmem>>, %arg2: memref<8x2xf32, #tpu.memory_space<vmem>>, %arg3: memref<80x2xf32, #tpu.memory_space<vmem>>, %arg4: memref<2x2xf32, #tpu.memory_space<vmem>>, %arg5: memref<1x2xf32, #tpu.memory_space<vmem>>, %arg6: memref<8x2xf32, #tpu.memory_space<vmem>>) attributes {dimension_semantics = [#tpu.dimension_semantics<parallel>], iteration_bounds = array<i64: 1>, scalar_prefetch = 0 : i64, scratch_operands = 0 : i64, tpu.core_type = #tpu.core_type<tc>, window_params = [{transform_indices = @transform_0, window_bounds = array<i64: 8, 80>}, {transform_indices = @transform_1, window_bounds = array<i64: 8, 2>}, {pipeline_mode = #tpu.pipeline_mode<synchronous>, transform_indices = @transform_2, window_bounds = array<i64: 80, 2>}, {pipeline_mode = #tpu.pipeline_mode<synchronous>, transform_indices = @transform_3, window_bounds = array<i64: 2, 2>}, {pipeline_mode = #tpu.pipeline_mode<synchronous>, transform_indices = @transform_4, window_bounds = array<i64: 1, 2>}, {transform_indices = @transform_5, window_bounds = array<i64: 8, 2>}]} {
    %c0 = arith.constant 0 : index
    %c0_0 = arith.constant 0 : index
    %0 = vector.load %arg1[%c0, %c0_0] : memref<8x80xf32, #tpu.memory_space<vmem>>, vector<8x80xf32>
    %c0_1 = arith.constant 0 : index
    %c0_2 = arith.constant 0 : index
    %1 = vector.load %arg3[%c0_1, %c0_2] : memref<80x2xf32, #tpu.memory_space<vmem>>, vector<80x2xf32>
    %cst = arith.constant dense<0.000000e+00> : vector<8x2xf32>
    %2 = tpu.matmul %0, %1, %cst {dimension_numbers = #tpu.dot_dimension_numbers<[1], [0], [0], [1], [0, 0, 1, 1], [], []>} : vector<8x80xf32>, vector<80x2xf32>, vector<8x2xf32> -> vector<8x2xf32>
    %c0_3 = arith.constant 0 : index
    %c0_4 = arith.constant 0 : index
    %3 = vector.load %arg2[%c0_3, %c0_4] : memref<8x2xf32, #tpu.memory_space<vmem>>, vector<8x2xf32>
    %c0_5 = arith.constant 0 : index
    %c0_6 = arith.constant 0 : index
    %4 = vector.load %arg4[%c0_5, %c0_6] : memref<2x2xf32, #tpu.memory_space<vmem>>, vector<2x2xf32>
    %cst_7 = arith.constant dense<0.000000e+00> : vector<8x2xf32>
    %5 = tpu.matmul %3, %4, %cst_7 {dimension_numbers = #tpu.dot_dimension_numbers<[1], [0], [0], [1], [0, 0, 1, 1], [], []>} : vector<8x2xf32>, vector<2x2xf32>, vector<8x2xf32> -> vector<8x2xf32>
    %6 = arith.addf %2, %5 : vector<8x2xf32>
    %c0_8 = arith.constant 0 : index
    %c0_9 = arith.constant 0 : index
    %7 = vector.load %arg5[%c0_8, %c0_9] : memref<1x2xf32, #tpu.memory_space<vmem>>, vector<1x2xf32>
    %8 = vector.broadcast %7 : vector<1x2xf32> to vector<8x2xf32>
    %9 = arith.addf %6, %8 : vector<8x2xf32>
    %c0_10 = arith.constant 0 : index
    %c0_11 = arith.constant 0 : index
    %10 = vector.load %arg6[%c0_10, %c0_11] : memref<8x2xf32, #tpu.memory_space<vmem>>, vector<8x2xf32>
    tpu.vector_store %arg6[%c0_10, %c0_11], %9 {strides = array<i32>} : memref<8x2xf32, #tpu.memory_space<vmem>>, vector<8x2xf32>,
    return
  }
  func.func @transform_0(%arg0: i32) -> (i32, i32) {
    %c0_i32 = arith.constant 0 : i32
    %c0_i32_0 = arith.constant 0 : i32
    return %arg0, %c0_i32 : i32, i32
  }
  func.func @transform_1(%arg0: i32) -> (i32, i32) {
    %c0_i32 = arith.constant 0 : i32
    %c0_i32_0 = arith.constant 0 : i32
    return %arg0, %c0_i32 : i32, i32
  }
  func.func @transform_2(%arg0: i32) -> (i32, i32) {
    %c0_i32 = arith.constant 0 : i32
    %c0_i32_0 = arith.constant 0 : i32
    %c0_i32_1 = arith.constant 0 : i32
    return %c0_i32, %c0_i32_0 : i32, i32
  }
  func.func @transform_3(%arg0: i32) -> (i32, i32) {
    %c0_i32 = arith.constant 0 : i32
    %c0_i32_0 = arith.constant 0 : i32
    %c0_i32_1 = arith.constant 0 : i32
    return %c0_i32, %c0_i32_0 : i32, i32
  }
  func.func @transform_4(%arg0: i32) -> (i32, i32) {
    %c0_i32 = arith.constant 0 : i32
    %c0_i32_0 = arith.constant 0 : i32
    %c0_i32_1 = arith.constant 0 : i32
    return %c0_i32, %c0_i32_0 : i32, i32
  }
  func.func @transform_5(%arg0: i32) -> (i32, i32) {
    %c0_i32 = arith.constant 0 : i32
    %c0_i32_0 = arith.constant 0 : i32
    return %arg0, %c0_i32 : i32, i32
  }
}

</mosaic_0001>

<llo_original>
// kernel: tpu_custom_call.1
$region0: #{tpu_custom_call.1}
  #allocation0 [shape = 'u32[]', space=smem, size = 0x4, offset = 0x4, fixed_abs, tag = 'smem constant byte address 0x4 - core index']
  #allocation1 [shape = 'u32[144,128]{1,0:T(1,128)}', space=vmem, size = 0x12000, scoped, tag = 'internal scratch']
  %s0 = inlined_call_operand.vmem [shape: f32[8,80], index: 0, kind: input, shape index: {}]
  %s1 = inlined_call_operand.vmem [shape: f32[8,2], index: 1, kind: input, shape index: {}]
  %s2 = inlined_call_operand.vmem [shape: f32[80,2], index: 2, kind: input, shape index: {}]
  %s3 = inlined_call_operand.vmem [shape: f32[2,2], index: 3, kind: input, shape index: {}]
  %s4 = inlined_call_operand.vmem [shape: f32[1,2], index: 4, kind: input, shape index: {}]
  %s5 = inlined_call_operand.vmem [shape: f32[8,2], index: 5, kind: output, shape index: {}]
  %s6 = sld [smem:[#allocation0]]
  $region30: #{tpu_custom_call.1} parent=0
    _
  %s8 = ssub.s32 1, %s6
  %s9 = scalar_select 0, %s8, %s6
  // Predicated region
  $region2: #{tpu_custom_call.1} parent=0 // pred_check
    _
  $region3: #{tpu_custom_call.1} parent=0 // pred_check_branch
    %11 = sbr.rel (0) target = $region5
  $region4: #{tpu_custom_call.1} parent=0 // pred_region
    _
  $region5: #{tpu_custom_call.1} parent=0 // pred_fallthru
    _
  // Predicated region
  $region6: #{tpu_custom_call.1} parent=0 // pred_check
    _
  $region7: #{tpu_custom_call.1} parent=0 // pred_check_branch
    %13 = sbr.rel (0) target = $region9
  $region8: #{tpu_custom_call.1} parent=0 // pred_region
    _
  $region9: #{tpu_custom_call.1} parent=0 // pred_fallthru
    _
  // Predicated region
  $region10: #{tpu_custom_call.1} parent=0 // pred_check
    _
  $region11: #{tpu_custom_call.1} parent=0 // pred_check_branch
    %15 = sbr.rel (0) target = $region13
  $region12: #{tpu_custom_call.1} parent=0 // pred_region
    _
  $region13: #{tpu_custom_call.1} parent=0 // pred_fallthru
    _
  // Predicated region
  $region14: #{tpu_custom_call.1} parent=0 // pred_check
    _
  $region15: #{tpu_custom_call.1} parent=0 // pred_check_branch
    %17 = sbr.rel (0) target = $region17
  $region16: #{tpu_custom_call.1} parent=0 // pred_region
    _
  $region17: #{tpu_custom_call.1} parent=0 // pred_fallthru
    _
  // Predicated region
  $region18: #{tpu_custom_call.1} parent=0 // pred_check
    _
  $region19: #{tpu_custom_call.1} parent=0 // pred_check_branch
    %19 = sbr.rel (0) target = $region21
  $region20: #{tpu_custom_call.1} parent=0 // pred_region
    _
  $region21: #{tpu_custom_call.1} parent=0 // pred_fallthru
    _
  %v20 = vld [vmem:[%s0] sm:$0xff]
  %v21 = vld [vmem:[%s2] sm:$0xff]
  %v22 = vld [vmem:[%s2 + $0x8] sm:$0xff]
  %v23 = vld [vmem:[%s2 + $0x10] sm:$0xff]
  %v24 = vld [vmem:[%s2 + $0x18] sm:$0xff]
  %v25 = vld [vmem:[%s2 + $0x20] sm:$0xff]
  %v26 = vld [vmem:[%s2 + $0x28] sm:$0xff]
  %v27 = vld [vmem:[%s2 + $0x30] sm:$0xff]
  %v28 = vld [vmem:[%s2 + $0x38] sm:$0xff]
  %v29 = vld [vmem:[%s2 + $0x40] sm:$0xff]
  %v30 = vld [vmem:[%s2 + $0x48] sm:$0xff]
  %v31 = vld [vmem:[%s1] sm:$0xff]
  %v32 = vld [vmem:[%s3] sm:$0x3]
  %vm33 = vcmask 15360
  %v35 = vsel %vm33, %v31, 0
  %vm37 = vcmask 1041408
  %v39 = vsel %vm37, %v32, 0
  %41 = vmatprep.subr.mxu0 0.0
  %42 = vmatpush1.msra.mxu0 %v39
  %43 = vmatprep.subr.mxu0 0.0
  %44 = vmatpush1.msra.mxu0 0.0
  %45 = vmatprep.subr.mxu0 0.0
  %46 = vmatpush1.msra.mxu0 0.0
  %47 = vmatprep.subr.mxu0 0.0
  %48 = vmatpush1.msra.mxu0 0.0
  %49 = vmatprep.subr.mxu0 0.0
  %50 = vmatpush1.msra.mxu0 0.0
  %51 = vmatprep.subr.mxu0 0.0
  %52 = vmatpush1.msra.mxu0 0.0
  %53 = vmatprep.subr.mxu0 0.0
  %54 = vmatpush1.msra.mxu0 0.0
  %55 = vmatprep.subr.mxu0 0.0
  %56 = vmatpush1.msra.mxu0 0.0
  %57 = vmatprep.subr.mxu0 0.0
  %58 = vmatpush1.msra.mxu0 0.0
  %59 = vmatprep.subr.mxu0 0.0
  %60 = vmatpush1.msra.mxu0 0.0
  %61 = vmatprep.subr.mxu0 0.0
  %62 = vmatpush1.msra.mxu0 0.0
  %63 = vmatprep.subr.mxu0 0.0
  %64 = vmatpush1.msra.mxu0 0.0
  %65 = vmatprep.subr.mxu0 0.0
  %66 = vmatpush1.msra.mxu0 0.0
  %67 = vmatprep.subr.mxu0 0.0
  %68 = vmatpush1.msra.mxu0 0.0
  %69 = vmatprep.subr.mxu0 0.0
  %70 = vmatpush1.msra.mxu0 0.0
  %71 = vmatprep.subr.mxu0 0.0
  %72 = vmatpush1.msra.mxu0 0.0
  %73 = vmatprep.subr.mxu0 0.0
  %74 = vmatpush1.msra.mxu0 0.0
  %75 = vmatprep.subr.mxu0 0.0
  %76 = vmatpush1.msra.mxu0 0.0
  %77 = vmatprep.subr.mxu0 0.0
  %78 = vmatpush1.msra.mxu0 0.0
  %79 = vmatprep.subr.mxu0 0.0
  %80 = vmatpush1.msra.mxu0 0.0
  %81 = vmatprep.subr.mxu0 0.0
  %82 = vmatpush1.msra.mxu0 0.0
  %83 = vmatprep.subr.mxu0 0.0
  %84 = vmatpush1.msra.mxu0 0.0
  %85 = vmatprep.subr.mxu0 0.0
  %86 = vmatpush1.msra.mxu0 0.0
  %87 = vmatprep.subr.mxu0 0.0
  %88 = vmatpush1.msra.mxu0 0.0
  %89 = vmatprep.subr.mxu0 0.0
  %90 = vmatpush1.msra.mxu0 0.0
  %91 = vmatprep.subr.mxu0 0.0
  %92 = vmatpush1.msra.mxu0 0.0
  %93 = vmatprep.subr.mxu0 0.0
  %94 = vmatpush1.msra.mxu0 0.0
  %95 = vmatprep.subr.mxu0 0.0
  %96 = vmatpush1.msra.mxu0 0.0
  %97 = vmatprep.subr.mxu0 0.0
  %98 = vmatpush1.msra.mxu0 0.0
  %99 = vmatprep.subr.mxu0 0.0
  %100 = vmatpush1.msra.mxu0 0.0
  %101 = vmatprep.subr.mxu0 0.0
  %102 = vmatpush1.msra.mxu0 0.0
  %103 = vmatprep.subr.mxu0 0.0
  %104 = vmatpush1.msra.mxu0 0.0
  %105 = vmatprep.mubr.f32.mxu0 0.0
  %106 = vmatmul.mubr.f32.gmra.mrb[0].mxu0 %v35
  %v107 = vpop.f32.mrb[0].mxu0
  %v108 = vadd.f32 0.0, %v107
  %v109 = vpop.f32.mrb[0].mxu0
  %110 = vdwg.mxu0
  %vm111 = vcmask 654336
  %v113 = vsel %vm111, %v20, 0
  %115 = vmatprep.subr.mxu0 0.0
  %116 = vmatpush1.msra.mxu0 %v21
  %117 = vmatprep.subr.mxu0 0.0
  %118 = vmatpush1.msra.mxu0 %v22
  %119 = vmatprep.subr.mxu0 0.0
  %120 = vmatpush1.msra.mxu0 %v23
  %121 = vmatprep.subr.mxu0 0.0
  %122 = vmatpush1.msra.mxu0 %v24
  %123 = vmatprep.subr.mxu0 0.0
  %124 = vmatpush1.msra.mxu0 %v25
  %125 = vmatprep.subr.mxu0 0.0
  %126 = vmatpush1.msra.mxu0 %v26
  %127 = vmatprep.subr.mxu0 0.0
  %128 = vmatpush1.msra.mxu0 %v27
  %129 = vmatprep.subr.mxu0 0.0
  %130 = vmatpush1.msra.mxu0 %v28
  %131 = vmatprep.subr.mxu0 0.0
  %132 = vmatpush1.msra.mxu0 %v29
  %133 = vmatprep.subr.mxu0 0.0
  %134 = vmatpush1.msra.mxu0 %v30
  %135 = vmatprep.subr.mxu0 0.0
  %136 = vmatpush1.msra.mxu0 0.0
  %137 = vmatprep.subr.mxu0 0.0
  %138 = vmatpush1.msra.mxu0 0.0
  %139 = vmatprep.subr.mxu0 0.0
  %140 = vmatpush1.msra.mxu0 0.0
  %141 = vmatprep.subr.mxu0 0.0
  %142 = vmatpush1.msra.mxu0 0.0
  %143 = vmatprep.subr.mxu0 0.0
  %144 = vmatpush1.msra.mxu0 0.0
  %145 = vmatprep.subr.mxu0 0.0
  %146 = vmatpush1.msra.mxu0 0.0
  %147 = vmatprep.subr.mxu0 0.0
  %148 = vmatpush1.msra.mxu0 0.0
  %149 = vmatprep.subr.mxu0 0.0
  %150 = vmatpush1.msra.mxu0 0.0
  %151 = vmatprep.subr.mxu0 0.0
  %152 = vmatpush1.msra.mxu0 0.0
  %153 = vmatprep.subr.mxu0 0.0
  %154 = vmatpush1.msra.mxu0 0.0
  %155 = vmatprep.subr.mxu0 0.0
  %156 = vmatpush1.msra.mxu0 0.0
  %157 = vmatprep.subr.mxu0 0.0
  %158 = vmatpush1.msra.mxu0 0.0
  %159 = vmatprep.subr.mxu0 0.0
  %160 = vmatpush1.msra.mxu0 0.0
  %161 = vmatprep.subr.mxu0 0.0
  %162 = vmatpush1.msra.mxu0 0.0
  %163 = vmatprep.subr.mxu0 0.0
  %164 = vmatpush1.msra.mxu0 0.0
  %165 = vmatprep.subr.mxu0 0.0
  %166 = vmatpush1.msra.mxu0 0.0
  %167 = vmatprep.subr.mxu0 0.0
  %168 = vmatpush1.msra.mxu0 0.0
  %169 = vmatprep.subr.mxu0 0.0
  %170 = vmatpush1.msra.mxu0 0.0
  %171 = vmatprep.subr.mxu0 0.0
  %172 = vmatpush1.msra.mxu0 0.0
  %173 = vmatprep.subr.mxu0 0.0
  %174 = vmatpush1.msra.mxu0 0.0
  %175 = vmatprep.subr.mxu0 0.0
  %176 = vmatpush1.msra.mxu0 0.0
  %177 = vmatprep.subr.mxu0 0.0
  %178 = vmatpush1.msra.mxu0 0.0
  %179 = vmatprep.mubr.f32.mxu0 0.0
  %180 = vmatmul.mubr.f32.gmra.mrb[0].mxu0 %v113
  %v181 = vpop.f32.mrb[0].mxu0
  %v182 = vadd.f32 %v108, %v181
  %v183 = vpop.f32.mrb[0].mxu0
  %184 = vdwg.mxu0
  %v185 = vld [vmem:[%s4] sm:$0x1]
  %v187 = vlaneseq
  %v188 = vshrl.u32 %v187, 7
  %v189 = vsub.s32 0, %v188
  %v190 = vrot.slane %v185, %v189
  %v192 = vadd.f32 %v182, %v190
  %193 = vst.msk [vmem:[%s5] sm:$0xff] %vm33, %v192
  // Predicated region
  $region22: #{tpu_custom_call.1} parent=0 // pred_check
    _
  $region23: #{tpu_custom_call.1} parent=0 // pred_check_branch
    %195 = sbr.rel (0) target = $region25
  $region24: #{tpu_custom_call.1} parent=0 // pred_region
    _
  $region25: #{tpu_custom_call.1} parent=0 // pred_fallthru
    _
  // Predicated region
  $region26: #{tpu_custom_call.1} parent=0 // pred_check
    _
  $region27: #{tpu_custom_call.1} parent=0 // pred_check_branch
    %197 = sbr.rel (0) target = $region29
  $region28: #{tpu_custom_call.1} parent=0 // pred_region
    _
  $region29: #{tpu_custom_call.1} parent=0 // pred_fallthru
    _

</llo_original>
